<compile_context>
chip_gen: v7x
topology: tpu7x:2x2x1
jax: 0.10.0
libtpu: 0.0.40
codegen_flags: <defaults>
</compile_context>

<pallas_src>
import functools

import jax
import jax.numpy as jnp
from jax import lax
from jax.experimental import pallas as pl
from jax.experimental.pallas import tpu as pltpu


# ----------------------------------------------------------------------------
# Region computation (pure Python port of RMAC._get_regions)
# ----------------------------------------------------------------------------
def get_regions(h: int, w: int, level_n: int):
    m = 1
    n_h, n_w = 1, 1
    regions = []
    if h != w:
        min_edge = min(h, w)
        left_space = max(h, w) - min(h, w)
        iou_target = 0.4
        iou_best = 1.0
        while True:
            iou_tmp = (min_edge ** 2 - min_edge * (left_space // m)) / min_edge ** 2
            if iou_tmp <= 0:
                m += 1
                continue
            if abs(iou_tmp - iou_target) <= iou_best:
                iou_best = abs(iou_tmp - iou_target)
                m += 1
            else:
                break
        if h < w:
            n_w = m
        else:
            n_h = m
    for i in range(level_n):
        region_width = int(2 * 1.0 / (i + 2) * min(h, w))
        step_size_h = (h - region_width) // n_h
        step_size_w = (w - region_width) // n_w
        for x in range(n_h):
            for y in range(n_w):
                st_x = step_size_h * x
                ed_x = st_x + region_width - 1
                assert ed_x < h
                st_y = step_size_w * y
                ed_y = st_y + region_width - 1
                assert ed_y < w
                regions.append((st_x, st_y, ed_x, ed_y))
        n_h += 1
        n_w += 1
    return regions


def _group_regions_by_h_window(regions):
    """Group regions by their H-window so the H-reduce is shared.

    Torch slices are exclusive at the end (st:ed), so the pooled window size is
    ed - st. Duplicated regions (possible when a step size is 0) are preserved.
    """
    groups = {}
    for st_x, st_y, ed_x, ed_y in regions:
        groups.setdefault((st_x, ed_x - st_x), []).append((st_y, ed_y - st_y))
    return tuple((k, tuple(v)) for k, v in groups.items())


def _round_up(x: int, m: int) -> int:
    return -(-x // m) * m


# ----------------------------------------------------------------------------
# Pallas kernel: regional max-pool + per-sample L2 normalize + sum over regions
# ----------------------------------------------------------------------------
def _rmac_kernel(fea_ref, out_ref, *, h_groups):
    # fea_ref: (bn, H, W, C) NHWC tile in VMEM (C -> lanes, W -> sublanes)
    # out_ref: (bn, 1, C)
    region_maxes = []
    for (st_x, rh), y_windows in h_groups:
        # Max over the H-window, computed once and shared by every region that
        # uses this H-window.  Accumulate from chunked (<=8 row) reads straight
        # off the ref so the live temporary stays one (bn, W, C) slab in the
        # *input* dtype (max is exact in bf16; no widened strip is materialized).
        hstrip = None
        r = 0
        while r < rh:
            chs = min(8, rh - r)
            chunk = fea_ref[:, st_x + r:st_x + r + chs, :, :]      # (bn,chs,W,C)
            cmax = jnp.max(chunk, axis=1)                          # (bn,W,C)
            hstrip = cmax if hstrip is None else jnp.maximum(hstrip, cmax)
            r += chs
        for st_y, rw in y_windows:
            # W-window max: cheap sublane combine on the small strip.
            region_maxes.append(jnp.max(hstrip[:, st_y:st_y + rw, :], axis=1))
    # Batched per-region L2 normalization over channels (one lane reduce, one
    # rsqrt on the EUP, one multiply), then sum over regions.
    stacked = jnp.stack(region_maxes, axis=1).astype(jnp.float32)   # (bn,R,C)
    sumsq = jnp.sum(stacked * stacked, axis=-1, keepdims=True)      # (bn,R,1)
    # NOTE: no epsilon, to match torch.norm division in the PyTorch module
    # exactly (an all-zero region vector would give inf/NaN there too).
    normalized = stacked * lax.rsqrt(sumsq)
    out_ref[...] = jnp.sum(normalized, axis=1, keepdims=True).astype(out_ref.dtype)


# ----------------------------------------------------------------------------
# Wrapper
# ----------------------------------------------------------------------------
def rmac_forward(fea: jax.Array, level_n: int, block_n: int | None = None) -> jax.Array:
    """RMAC forward. 4-D NCHW input -> (N, C); 2-D input passes through."""
    if fea.ndim == 2:
        # Matches RMAC.forward's 2-D passthrough (no aggregation needed).
        return fea
    n, c, h, w = fea.shape
    regions = get_regions(h, w, level_n)
    # Guard against degenerate (empty) regions on very small spatial dims.
    for st_x, st_y, ed_x, ed_y in regions:
        assert ed_x - st_x >= 1 and ed_y - st_y >= 1, "degenerate RMAC region"
    h_groups = _group_regions_by_h_window(regions)
    n_regions = len(regions)

    # Channels-last so C is the (dense) lane dimension inside the kernel.  One
    # fused XLA transpose pass; the kernel itself then runs at full lane
    # occupancy and is HBM-bound on realistic RMAC shapes.
    fea_nhwc = jnp.transpose(fea, (0, 2, 3, 1))          # (N, H, W, C)

    itemsize = jnp.dtype(fea.dtype).itemsize
    try:
        vmem_cap = int(pltpu.get_tpu_info().vmem_capacity_bytes)
    except Exception:
        vmem_cap = 64 * 1024 * 1024                      # conservative: v7x

    if block_n is None:
        # Padded footprint of one sample's (H, W, C) tile: last two dims round
        # to the (8*packing, 128) native tile.
        sublane = 8 * max(1, 4 // itemsize)
        padded_sample = h * _round_up(w, sublane) * _round_up(c, 128) * itemsize
        budget = int(vmem_cap * 0.55)                    # headroom for temps/out
        bn = max(1, budget // (2 * padded_sample))       # x2: double-buffered in
        bn = min(bn, n)
        if n >= 2:
            bn = min(bn, max(1, n // 2))  # >=2 grid steps: megacore + overlap
    else:
        bn = block_n
    grid = (pl.cdiv(n, bn),)  # ragged tail block is safe: rows are independent

    # Advisory cost estimate (kernel only; excludes the wrapper transpose).
    flops = 0
    for (_, rh), ys in h_groups:
        flops += n * c * rh * w                          # shared H-window maxes
        for _, rw in ys:
            flops += n * c * rw                          # W-window maxes
    flops += n * n_regions * c * 3                       # square + sum + scale
    cost = pl.CostEstimate(
        flops=int(flops),
        transcendentals=int(n * n_regions),
        bytes_accessed=int(n * c * h * w * itemsize + n * c * itemsize),
    )

    kernel = functools.partial(_rmac_kernel, h_groups=h_groups)
    out3 = pl.pallas_call(
        kernel,
        out_shape=jax.ShapeDtypeStruct((n, 1, c), fea.dtype),
        grid=grid,
        in_specs=[pl.BlockSpec((bn, h, w, c), lambda i: (i, 0, 0, 0))],
        out_specs=pl.BlockSpec((bn, 1, c), lambda i: (i, 0, 0)),
        compiler_params=pltpu.CompilerParams(
            dimension_semantics=("parallel",),
            vmem_limit_bytes=max(32 << 20, min(int(vmem_cap * 0.85), 112 << 20)),
        ),
        cost_estimate=cost,
    )(fea_nhwc)
    return out3.reshape(n, c)


# ----------------------------------------------------------------------------
# Pure-JAX reference (mirrors the PyTorch code) for a sanity check
# ----------------------------------------------------------------------------
def rmac_reference(fea_nchw: jax.Array, level_n: int) -> jax.Array:
    n, c, h, w = fea_nchw.shape
    regions = get_regions(h, w, level_n)
    final = None
    for (st_x, st_y, ed_x, ed_y) in regions:
        region = fea_nchw[:, :, st_x:ed_x, st_y:ed_y]
        region_fea = jnp.max(jnp.max(region, axis=3), axis=2)
        norm = jnp.linalg.norm(region_fea, axis=1, keepdims=True)
        region_fea = region_fea / norm
        final = region_fea if final is None else final + region_fea
    return final


if __name__ == "__main__":
    level_n = 3
    key = jax.random.PRNGKey(0)
    # Small NCHW feature map: batch=2, channels=4, spatial=16x16
    fea = jax.random.normal(key, (2, 4, 16, 16), dtype=jnp.float32)

    # Default heuristic picks bn=1 here (bn capped at n//2) -> grid=(2,),
    # exercising the multi-step pipelined path.
    out = jax.block_until_ready(rmac_forward(fea, level_n))
    ref = jax.block_until_ready(rmac_reference(fea, level_n))

    assert out.shape == (2, 4), out.shape
    assert bool(jnp.all(jnp.isfinite(out)))
    err = float(jnp.max(jnp.abs(out - ref)))
    assert jnp.allclose(out, ref, atol=1e-4, rtol=1e-4), err

    print("KERNEL_OK")
</pallas_src>

<mosaic_0001>
module attributes {stable_mosaic.version = 11 : i64} {
  func.func @_rmac_kernel(%arg0: i32, %arg1: memref<1x16x16x4xf32, #tpu.memory_space<vmem>>, %arg2: memref<1x1x4xf32, #tpu.memory_space<vmem>>) attributes {dimension_semantics = [#tpu.dimension_semantics<parallel>], iteration_bounds = array<i64: 2>, scalar_prefetch = 0 : i64, scratch_operands = 0 : i64, tpu.core_type = #tpu.core_type<tc>, window_params = [{transform_indices = @transform_0, window_bounds = array<i64: 1, 16, 16, 4>}, {transform_indices = @transform_1, window_bounds = array<i64: 1, 1, 4>}]} {
    %c0 = arith.constant 0 : index
    %c0_0 = arith.constant 0 : index
    %c0_1 = arith.constant 0 : index
    %c0_2 = arith.constant 0 : index
    %0 = vector.load %arg1[%c0, %c0_0, %c0_1, %c0_2] : memref<1x16x16x4xf32, #tpu.memory_space<vmem>>, vector<1x8x16x4xf32>
    %cst = arith.constant dense<0xFF800000> : vector<1x16x4xf32>
    %1 = vector.multi_reduction <maximumf>, %0, %cst [1] : vector<1x8x16x4xf32> to vector<1x16x4xf32>
    %c0_3 = arith.constant 0 : index
    %c8 = arith.constant 8 : index
    %c0_4 = arith.constant 0 : index
    %c0_5 = arith.constant 0 : index
    %2 = vector.load %arg1[%c0_3, %c8, %c0_4, %c0_5] : memref<1x16x16x4xf32, #tpu.memory_space<vmem>>, vector<1x7x16x4xf32>
    %cst_6 = arith.constant dense<0xFF800000> : vector<1x16x4xf32>
    %3 = vector.multi_reduction <maximumf>, %2, %cst_6 [1] : vector<1x7x16x4xf32> to vector<1x16x4xf32>
    %4 = arith.maximumf %1, %3 : vector<1x16x4xf32>
    %5 = vector.extract_strided_slice %4 {offsets = [0, 0, 0], sizes = [1, 15, 4], strides = [1, 1, 1]} : vector<1x16x4xf32> to vector<1x15x4xf32>
    %cst_7 = arith.constant dense<0xFF800000> : vector<1x4xf32>
    %6 = vector.multi_reduction <maximumf>, %5, %cst_7 [1] : vector<1x15x4xf32> to vector<1x4xf32>
    %c0_8 = arith.constant 0 : index
    %c0_9 = arith.constant 0 : index
    %c0_10 = arith.constant 0 : index
    %c0_11 = arith.constant 0 : index
    %7 = vector.load %arg1[%c0_8, %c0_9, %c0_10, %c0_11] : memref<1x16x16x4xf32, #tpu.memory_space<vmem>>, vector<1x8x16x4xf32>
    %cst_12 = arith.constant dense<0xFF800000> : vector<1x16x4xf32>
    %8 = vector.multi_reduction <maximumf>, %7, %cst_12 [1] : vector<1x8x16x4xf32> to vector<1x16x4xf32>
    %c0_13 = arith.constant 0 : index
    %c8_14 = arith.constant 8 : index
    %c0_15 = arith.constant 0 : index
    %c0_16 = arith.constant 0 : index
    %9 = vector.load %arg1[%c0_13, %c8_14, %c0_15, %c0_16] : memref<1x16x16x4xf32, #tpu.memory_space<vmem>>, vector<1x1x16x4xf32>
    %cst_17 = arith.constant dense<0xFF800000> : vector<1x16x4xf32>
    %10 = vector.multi_reduction <maximumf>, %9, %cst_17 [1] : vector<1x1x16x4xf32> to vector<1x16x4xf32>
    %11 = arith.maximumf %8, %10 : vector<1x16x4xf32>
    %12 = vector.extract_strided_slice %11 {offsets = [0, 0, 0], sizes = [1, 9, 4], strides = [1, 1, 1]} : vector<1x16x4xf32> to vector<1x9x4xf32>
    %cst_18 = arith.constant dense<0xFF800000> : vector<1x4xf32>
    %13 = vector.multi_reduction <maximumf>, %12, %cst_18 [1] : vector<1x9x4xf32> to vector<1x4xf32>
    %14 = vector.extract_strided_slice %11 {offsets = [0, 3, 0], sizes = [1, 9, 4], strides = [1, 1, 1]} : vector<1x16x4xf32> to vector<1x9x4xf32>
    %cst_19 = arith.constant dense<0xFF800000> : vector<1x4xf32>
    %15 = vector.multi_reduction <maximumf>, %14, %cst_19 [1] : vector<1x9x4xf32> to vector<1x4xf32>
    %c0_20 = arith.constant 0 : index
    %c3 = arith.constant 3 : index
    %c0_21 = arith.constant 0 : index
    %c0_22 = arith.constant 0 : index
    %16 = vector.load %arg1[%c0_20, %c3, %c0_21, %c0_22] : memref<1x16x16x4xf32, #tpu.memory_space<vmem>>, vector<1x8x16x4xf32>
    %cst_23 = arith.constant dense<0xFF800000> : vector<1x16x4xf32>
    %17 = vector.multi_reduction <maximumf>, %16, %cst_23 [1] : vector<1x8x16x4xf32> to vector<1x16x4xf32>
    %c0_24 = arith.constant 0 : index
    %c11 = arith.constant 11 : index
    %c0_25 = arith.constant 0 : index
    %c0_26 = arith.constant 0 : index
    %18 = vector.load %arg1[%c0_24, %c11, %c0_25, %c0_26] : memref<1x16x16x4xf32, #tpu.memory_space<vmem>>, vector<1x1x16x4xf32>
    %cst_27 = arith.constant dense<0xFF800000> : vector<1x16x4xf32>
    %19 = vector.multi_reduction <maximumf>, %18, %cst_27 [1] : vector<1x1x16x4xf32> to vector<1x16x4xf32>
    %20 = arith.maximumf %17, %19 : vector<1x16x4xf32>
    %21 = vector.extract_strided_slice %20 {offsets = [0, 0, 0], sizes = [1, 9, 4], strides = [1, 1, 1]} : vector<1x16x4xf32> to vector<1x9x4xf32>
    %cst_28 = arith.constant dense<0xFF800000> : vector<1x4xf32>
    %22 = vector.multi_reduction <maximumf>, %21, %cst_28 [1] : vector<1x9x4xf32> to vector<1x4xf32>
    %23 = vector.extract_strided_slice %20 {offsets = [0, 3, 0], sizes = [1, 9, 4], strides = [1, 1, 1]} : vector<1x16x4xf32> to vector<1x9x4xf32>
    %cst_29 = arith.constant dense<0xFF800000> : vector<1x4xf32>
    %24 = vector.multi_reduction <maximumf>, %23, %cst_29 [1] : vector<1x9x4xf32> to vector<1x4xf32>
    %c0_30 = arith.constant 0 : index
    %c0_31 = arith.constant 0 : index
    %c0_32 = arith.constant 0 : index
    %c0_33 = arith.constant 0 : index
    %25 = vector.load %arg1[%c0_30, %c0_31, %c0_32, %c0_33] : memref<1x16x16x4xf32, #tpu.memory_space<vmem>>, vector<1x7x16x4xf32>
    %cst_34 = arith.constant dense<0xFF800000> : vector<1x16x4xf32>
    %26 = vector.multi_reduction <maximumf>, %25, %cst_34 [1] : vector<1x7x16x4xf32> to vector<1x16x4xf32>
    %27 = vector.extract_strided_slice %26 {offsets = [0, 0, 0], sizes = [1, 7, 4], strides = [1, 1, 1]} : vector<1x16x4xf32> to vector<1x7x4xf32>
    %cst_35 = arith.constant dense<0xFF800000> : vector<1x4xf32>
    %28 = vector.multi_reduction <maximumf>, %27, %cst_35 [1] : vector<1x7x4xf32> to vector<1x4xf32>
    %29 = vector.extract_strided_slice %26 {offsets = [0, 2, 0], sizes = [1, 7, 4], strides = [1, 1, 1]} : vector<1x16x4xf32> to vector<1x7x4xf32>
    %cst_36 = arith.constant dense<0xFF800000> : vector<1x4xf32>
    %30 = vector.multi_reduction <maximumf>, %29, %cst_36 [1] : vector<1x7x4xf32> to vector<1x4xf32>
    %31 = vector.extract_strided_slice %26 {offsets = [0, 4, 0], sizes = [1, 7, 4], strides = [1, 1, 1]} : vector<1x16x4xf32> to vector<1x7x4xf32>
    %cst_37 = arith.constant dense<0xFF800000> : vector<1x4xf32>
    %32 = vector.multi_reduction <maximumf>, %31, %cst_37 [1] : vector<1x7x4xf32> to vector<1x4xf32>
    %c0_38 = arith.constant 0 : index
    %c2 = arith.constant 2 : index
    %c0_39 = arith.constant 0 : index
    %c0_40 = arith.constant 0 : index
    %33 = vector.load %arg1[%c0_38, %c2, %c0_39, %c0_40] : memref<1x16x16x4xf32, #tpu.memory_space<vmem>>, vector<1x7x16x4xf32>
    %cst_41 = arith.constant dense<0xFF800000> : vector<1x16x4xf32>
    %34 = vector.multi_reduction <maximumf>, %33, %cst_41 [1] : vector<1x7x16x4xf32> to vector<1x16x4xf32>
    %35 = vector.extract_strided_slice %34 {offsets = [0, 0, 0], sizes = [1, 7, 4], strides = [1, 1, 1]} : vector<1x16x4xf32> to vector<1x7x4xf32>
    %cst_42 = arith.constant dense<0xFF800000> : vector<1x4xf32>
    %36 = vector.multi_reduction <maximumf>, %35, %cst_42 [1] : vector<1x7x4xf32> to vector<1x4xf32>
    %37 = vector.extract_strided_slice %34 {offsets = [0, 2, 0], sizes = [1, 7, 4], strides = [1, 1, 1]} : vector<1x16x4xf32> to vector<1x7x4xf32>
    %cst_43 = arith.constant dense<0xFF800000> : vector<1x4xf32>
    %38 = vector.multi_reduction <maximumf>, %37, %cst_43 [1] : vector<1x7x4xf32> to vector<1x4xf32>
    %39 = vector.extract_strided_slice %34 {offsets = [0, 4, 0], sizes = [1, 7, 4], strides = [1, 1, 1]} : vector<1x16x4xf32> to vector<1x7x4xf32>
    %cst_44 = arith.constant dense<0xFF800000> : vector<1x4xf32>
    %40 = vector.multi_reduction <maximumf>, %39, %cst_44 [1] : vector<1x7x4xf32> to vector<1x4xf32>
    %c0_45 = arith.constant 0 : index
    %c4 = arith.constant 4 : index
    %c0_46 = arith.constant 0 : index
    %c0_47 = arith.constant 0 : index
    %41 = vector.load %arg1[%c0_45, %c4, %c0_46, %c0_47] : memref<1x16x16x4xf32, #tpu.memory_space<vmem>>, vector<1x7x16x4xf32>
    %cst_48 = arith.constant dense<0xFF800000> : vector<1x16x4xf32>
    %42 = vector.multi_reduction <maximumf>, %41, %cst_48 [1] : vector<1x7x16x4xf32> to vector<1x16x4xf32>
    %43 = vector.extract_strided_slice %42 {offsets = [0, 0, 0], sizes = [1, 7, 4], strides = [1, 1, 1]} : vector<1x16x4xf32> to vector<1x7x4xf32>
    %cst_49 = arith.constant dense<0xFF800000> : vector<1x4xf32>
    %44 = vector.multi_reduction <maximumf>, %43, %cst_49 [1] : vector<1x7x4xf32> to vector<1x4xf32>
    %45 = vector.extract_strided_slice %42 {offsets = [0, 2, 0], sizes = [1, 7, 4], strides = [1, 1, 1]} : vector<1x16x4xf32> to vector<1x7x4xf32>
    %cst_50 = arith.constant dense<0xFF800000> : vector<1x4xf32>
    %46 = vector.multi_reduction <maximumf>, %45, %cst_50 [1] : vector<1x7x4xf32> to vector<1x4xf32>
    %47 = vector.extract_strided_slice %42 {offsets = [0, 4, 0], sizes = [1, 7, 4], strides = [1, 1, 1]} : vector<1x16x4xf32> to vector<1x7x4xf32>
    %cst_51 = arith.constant dense<0xFF800000> : vector<1x4xf32>
    %48 = vector.multi_reduction <maximumf>, %47, %cst_51 [1] : vector<1x7x4xf32> to vector<1x4xf32>
    %49 = vector.shape_cast %6 : vector<1x4xf32> to vector<1x1x4xf32>
    %50 = vector.shape_cast %13 : vector<1x4xf32> to vector<1x1x4xf32>
    %51 = vector.shape_cast %15 : vector<1x4xf32> to vector<1x1x4xf32>
    %52 = vector.shape_cast %22 : vector<1x4xf32> to vector<1x1x4xf32>
    %53 = vector.shape_cast %24 : vector<1x4xf32> to vector<1x1x4xf32>
    %54 = vector.shape_cast %28 : vector<1x4xf32> to vector<1x1x4xf32>
    %55 = vector.shape_cast %30 : vector<1x4xf32> to vector<1x1x4xf32>
    %56 = vector.shape_cast %32 : vector<1x4xf32> to vector<1x1x4xf32>
    %57 = vector.shape_cast %36 : vector<1x4xf32> to vector<1x1x4xf32>
    %58 = vector.shape_cast %38 : vector<1x4xf32> to vector<1x1x4xf32>
    %59 = vector.shape_cast %40 : vector<1x4xf32> to vector<1x1x4xf32>
    %60 = vector.shape_cast %44 : vector<1x4xf32> to vector<1x1x4xf32>
    %61 = vector.shape_cast %46 : vector<1x4xf32> to vector<1x1x4xf32>
    %62 = vector.shape_cast %48 : vector<1x4xf32> to vector<1x1x4xf32>
    %63 = tpu.concatenate %49, %50, %51, %52, %53, %54, %55, %56, %57, %58, %59, %60, %61, %62 in 1 : vector<1x1x4xf32>, vector<1x1x4xf32>, vector<1x1x4xf32>, vector<1x1x4xf32>, vector<1x1x4xf32>, vector<1x1x4xf32>, vector<1x1x4xf32>, vector<1x1x4xf32>, vector<1x1x4xf32>, vector<1x1x4xf32>, vector<1x1x4xf32>, vector<1x1x4xf32>, vector<1x1x4xf32>, vector<1x1x4xf32> -> vector<1x14x4xf32>
    %64 = arith.mulf %63, %63 : vector<1x14x4xf32>
    %cst_52 = arith.constant dense<0.000000e+00> : vector<1x14xf32>
    %65 = vector.multi_reduction <add>, %64, %cst_52 [2] : vector<1x14x4xf32> to vector<1x14xf32>
    %66 = vector.shape_cast %65 : vector<1x14xf32> to vector<1x14x1xf32>
    %67 = math.rsqrt %66 : vector<1x14x1xf32>
    %68 = vector.broadcast %67 : vector<1x14x1xf32> to vector<1x14x4xf32>
    %69 = arith.mulf %63, %68 : vector<1x14x4xf32>
    %cst_53 = arith.constant dense<0.000000e+00> : vector<1x4xf32>
    %70 = vector.multi_reduction <add>, %69, %cst_53 [1] : vector<1x14x4xf32> to vector<1x4xf32>
    %71 = vector.shape_cast %70 : vector<1x4xf32> to vector<1x1x4xf32>
    %c0_54 = arith.constant 0 : index
    %c0_55 = arith.constant 0 : index
    %c0_56 = arith.constant 0 : index
    %72 = vector.load %arg2[%c0_54, %c0_55, %c0_56] : memref<1x1x4xf32, #tpu.memory_space<vmem>>, vector<1x1x4xf32>
    tpu.vector_store %arg2[%c0_54, %c0_55, %c0_56], %71 {strides = array<i32>} : memref<1x1x4xf32, #tpu.memory_space<vmem>>, vector<1x1x4xf32>,
    return
  }
  func.func @transform_0(%arg0: i32) -> (i32, i32, i32, i32) {
    %c0_i32 = arith.constant 0 : i32
    %c0_i32_0 = arith.constant 0 : i32
    %c0_i32_1 = arith.constant 0 : i32
    %c0_i32_2 = arith.constant 0 : i32
    return %arg0, %c0_i32, %c0_i32_0, %c0_i32_1 : i32, i32, i32, i32
  }
  func.func @transform_1(%arg0: i32) -> (i32, i32, i32) {
    %c0_i32 = arith.constant 0 : i32
    %c0_i32_0 = arith.constant 0 : i32
    %c0_i32_1 = arith.constant 0 : i32
    return %arg0, %c0_i32, %c0_i32_0 : i32, i32, i32
  }
}

</mosaic_0001>

<llo_original>
// kernel: tpu_custom_call.1
$region0: #{tpu_custom_call.1}
  #allocation0 [shape = 'u32[]', space=smem, size = 0x4, offset = 0x4, fixed_abs, tag = 'smem constant byte address 0x4 - core index']
  #allocation1 [shape = 'u32[144,128]{1,0:T(1,128)}', space=vmem, size = 0x12000, scoped, tag = 'internal scratch']
  %s0 = inlined_call_operand.vmem [shape: f32[2,16,16,4], index: 0, kind: input, shape index: {}]
  %s1 = inlined_call_operand.hbm [shape: f32[2,1,4], index: 1, kind: output, shape index: {}]
  %s2 = sld [smem:[#allocation0]]
  $region37: #{tpu_custom_call.1} parent=0
    _
  %s4 = ssub.s32 1, %s2
  %s5 = scalar_select 0, %s4, %s2
  $region1: #{tpu_custom_call.1} parent=0
    #allocation2 [shape = 'u8[1024]{0}', space=vmem, size = 0x400, scoped, tag = 'output window, operand 0']
    #allocation3 [shape = 's32[2]{0}', space=sflag, size = 0x8, scoped, tag = 'scoped memory for tpu_custom_call.1']
    %6 = vsyncpa [#allocation3], 0
    %s7 = scalar_lea.sflag [#allocation3], 1
    %8 = vsyncpa %s7, 0
    loop: start=0, step=1, limit=4
    $region2: #{tpu_custom_call.1} parent=1 // loop_pre_header
      _
    $region3: #{tpu_custom_call.1} parent=1 // loop_header
      %s10 = sphi 0, %s14
      %p11 = scmp.ge.s32.totalorder %s10, 4
      %s20 = sphi 0, %s22
      %s23 = sphi 0, %s20
      %s24 = sphi 0, %s23
      %s40 = sphi 0, %s24
      %s46 = sphi 0, %s48
      %s49 = sphi 0, %s46
      %s50 = sphi 0, %s49
      %s66 = sphi 0, %s50
    $region4: #{tpu_custom_call.1} parent=1 // loop_header_branch
      %13 = sbr.rel (%p11) target = $region8
    $region5: #{tpu_custom_call.1} parent=1 // loop_body
      %s15 = ssub.s32 %s10, 1
      %s16 = ssub.s32 %s10, 2
      %s17 = sadd.s32 %s10, 1
      %s18 = ssub.s32 %s10, %s17
      %p19 = scmp.eq.s32.totalorder %s18, 0
      %s21 = sadd.s32 %s20, 1
      %s22 = scalar_select %p19, %s20, %s21
      %p25 = pneg %p19
      %p26 = scmp.eq.s32.totalorder %s10, 1
      %p27 = por %p25, %p26
      %p28 = scmp.ne.s32.totalorder %s20, %s23
      %p29 = scmp.eq.s32.totalorder %s10, 0
      %p30 = por %p28, %p29
      %p31 = scmp.ne.s32.totalorder %s20, %s23
      %p32 = scmp.eq.s32.totalorder %s15, 1
      %p33 = por %p31, %p32
      %p34 = scmp.ne.s32.totalorder %s23, %s24
      %p35 = scmp.eq.s32.totalorder %s15, 0
      %p36 = por %p34, %p35
      %p37 = scmp.ne.s32.totalorder %s23, %s24
      %p38 = scmp.eq.s32.totalorder %s16, 1
      %p39 = por %p37, %p38
      %p41 = scmp.ne.s32.totalorder %s24, %s40
      %p42 = scmp.eq.s32.totalorder %s16, 0
      %p43 = por %p41, %p42
      %s44 = ssub.s32 %s10, %s17
      %p45 = scmp.eq.s32.totalorder %s44, 0
      %s47 = sadd.s32 %s46, 1
      %s48 = scalar_select %p45, %s46, %s47
      %p51 = pneg %p45
      %p52 = scmp.eq.s32.totalorder %s10, 1
      %p53 = por %p51, %p52
      %p54 = scmp.ne.s32.totalorder %s46, %s49
      %p55 = scmp.eq.s32.totalorder %s10, 0
      %p56 = por %p54, %p55
      %p57 = scmp.ne.s32.totalorder %s46, %s49
      %p58 = scmp.eq.s32.totalorder %s15, 1
      %p59 = por %p57, %p58
      %p60 = scmp.ne.s32.totalorder %s49, %s50
      %p61 = scmp.eq.s32.totalorder %s15, 0
      %p62 = por %p60, %p61
      %p63 = scmp.ne.s32.totalorder %s49, %s50
      %p64 = scmp.eq.s32.totalorder %s16, 1
      %p65 = por %p63, %p64
      %p67 = scmp.ne.s32.totalorder %s50, %s66
      %p68 = scmp.eq.s32.totalorder %s16, 0
      %p69 = por %p67, %p68
      %p70 = scmp.le.s32.totalorder 1, %s10
      %p71 = scmp.lt.s32.totalorder %s10, 3
      %p72 = pnand %p70, %p71
      %p73 = pneg %p72
      // Predicated region
      $region9: #{tpu_custom_call.1} parent=5 // pred_check
        _
      $region10: #{tpu_custom_call.1} parent=5 // pred_check_branch
        %75 = sbr.rel (%p72) target = $region12
      $region11: #{tpu_custom_call.1} parent=5 // pred_region
        %s76 = ssub.s32 %s10, 1
      $region12: #{tpu_custom_call.1} parent=5 // pred_fallthru
        _
      %p77 = scmp.lt.s32.totalorder %s10, 2
      // Predicated region
      $region13: #{tpu_custom_call.1} parent=5 // pred_check
        %p78 = pneg %p77
      $region14: #{tpu_custom_call.1} parent=5 // pred_check_branch
        %80 = sbr.rel (%p78) target = $region16
      $region15: #{tpu_custom_call.1} parent=5 // pred_region
        // Predicated region
        $region17: #{tpu_custom_call.1} parent=15 // pred_check
          %p81 = pneg %p30
        $region18: #{tpu_custom_call.1} parent=15 // pred_check_branch
          %83 = sbr.rel (%p81) target = $region20
        $region19: #{tpu_custom_call.1} parent=15 // pred_region
          %p84 = scmp.lt.s32.totalorder %s10, 1
          %s85 = scalar_select %p84, %s10, 1
          %s86 = smul.addr %s85, 32
          %s87 = smul.addr %s86, 8
          %s88 = scalar_lea.vmem %s0, %s87
        $region20: #{tpu_custom_call.1} parent=15 // pred_fallthru
          _
      $region16: #{tpu_custom_call.1} parent=5 // pred_fallthru
        _
      %p89 = scmp.le.s32.totalorder 1, %s10
      %p90 = scmp.lt.s32.totalorder %s10, 3
      %p91 = pnand %p89, %p90
      %p92 = pneg %p91
      // Predicated region
      $region21: #{tpu_custom_call.1} parent=5 // pred_check
        _
      $region22: #{tpu_custom_call.1} parent=5 // pred_check_branch
        %94 = sbr.rel (%p91) target = $region24
      $region23: #{tpu_custom_call.1} parent=5 // pred_region
        %s95 = ssub.s32 %s10, 1
        %p96 = scmp.lt.s32.totalorder %s15, 1
        %s97 = scalar_select %p96, %s15, 1
        %s98 = smul.addr %s97, 32
        %s99 = smul.addr %s98, 8
        %s100 = scalar_lea.vmem %s0, %s99
        %p101 = pneg %p36
        %p102 = pneg %p33
        %p103 = pneg %p62
        %p104 = pneg %p59
        %s105 = sand.u32 %s49, 1
        %s106 = scalar_lea.sflag [#allocation3], %s105
        %s107 = sand.u32 %s49, 1
        %s108 = scalar_lea.vmem [#allocation2], %s107
        %p109 = scmp.lt.s32.totalorder %s15, 1
        %s110 = scalar_select %p109, %s15, 1
        %s111 = smul.addr %s110, 32
        %s112 = smul.addr %s111, 8
        %s113 = scalar_lea.vmem %s0, %s112
        %v114 = vld [vmem:[%s113] sm:$0xff]
        %v115 = vld [vmem:[%s113 + $0x8] sm:$0xff]
        %v116 = vld [vmem:[%s113 + $0x10] sm:$0xff]
        %v117 = vld [vmem:[%s113 + $0x18] sm:$0xff]
        %v118 = vld [vmem:[%s113 + $0x20] sm:$0xff]
        %v119 = vld [vmem:[%s113 + $0x28] sm:$0xff]
        %v120 = vld [vmem:[%s113 + $0x30] sm:$0xff]
        %v121 = vld [vmem:[%s113 + $0x38] sm:$0xff]
        %v122 = vld [vmem:[%s113 + $0x40] sm:$0xff]
        %v123 = vld [vmem:[%s113 + $0x48] sm:$0xff]
        %v124 = vld [vmem:[%s113 + $0x50] sm:$0xff]
        %v125 = vld [vmem:[%s113 + $0x58] sm:$0xff]
        %v126 = vld [vmem:[%s113 + $0x60] sm:$0xff]
        %v127 = vld [vmem:[%s113 + $0x68] sm:$0xff]
        %v128 = vld [vmem:[%s113 + $0x70] sm:$0xff]
        %v129 = vld [vmem:[%s113 + $0x78] sm:$0xff]
        %vm130 = vcmask 31744
        %v131 = vsel %vm130, %v114, -inf
        %v132 = vsel %vm130, %v116, -inf
        %v133 = vsel %vm130, %v118, -inf
        %v134 = vmax.f32 %v131, %v133
        %v135 = vsel %vm130, %v120, -inf
        %v136 = vmax.f32 %v132, %v135
        %v137 = vsel %vm130, %v122, -inf
        %v138 = vmax.f32 %v134, %v137
        %v139 = vsel %vm130, %v124, -inf
        %v140 = vmax.f32 %v136, %v139
        %v141 = vsel %vm130, %v126, -inf
        %v142 = vmax.f32 %v138, %v141
        %v143 = vsel %vm130, %v128, -inf
        %v144 = vmax.f32 %v140, %v143
        %v145 = vmax.f32 %v142, %v144
        %v146 = vsel %vm130, %v115, -inf
        %v147 = vsel %vm130, %v117, -inf
        %v148 = vsel %vm130, %v119, -inf
        %v149 = vmax.f32 %v146, %v148
        %v150 = vsel %vm130, %v121, -inf
        %v151 = vmax.f32 %v147, %v150
        %v152 = vsel %vm130, %v123, -inf
        %v153 = vmax.f32 %v149, %v152
        %v154 = vsel %vm130, %v125, -inf
        %v155 = vmax.f32 %v151, %v154
        %v156 = vsel %vm130, %v127, -inf
        %v157 = vmax.f32 %v153, %v156
        %v158 = vsel %vm130, %v129, -inf
        %v159 = vmax.f32 %v155, %v158
        %v160 = vmax.f32 %v157, %v159
        %s161 = scalar_lea.vmem %s113, 128
        %v162 = vld [vmem:[%s161] sm:$0xff]
        %v163 = vld [vmem:[%s161 + $0x8] sm:$0xff]
        %v164 = vld [vmem:[%s161 + $0x10] sm:$0xff]
        %v165 = vld [vmem:[%s161 + $0x18] sm:$0xff]
        %v166 = vld [vmem:[%s161 + $0x20] sm:$0xff]
        %v167 = vld [vmem:[%s161 + $0x28] sm:$0xff]
        %v168 = vld [vmem:[%s161 + $0x30] sm:$0xff]
        %v169 = vld [vmem:[%s161 + $0x38] sm:$0xff]
        %v170 = vld [vmem:[%s161 + $0x40] sm:$0xff]
        %v171 = vld [vmem:[%s161 + $0x48] sm:$0xff]
        %v172 = vld [vmem:[%s161 + $0x50] sm:$0xff]
        %v173 = vld [vmem:[%s161 + $0x58] sm:$0xff]
        %v174 = vld [vmem:[%s161 + $0x60] sm:$0xff]
        %v175 = vld [vmem:[%s161 + $0x68] sm:$0xff]
        %v176 = vsel %vm130, %v162, -inf
        %v177 = vsel %vm130, %v164, -inf
        %v178 = vsel %vm130, %v166, -inf
        %v179 = vmax.f32 %v176, %v178
        %v180 = vsel %vm130, %v168, -inf
        %v181 = vmax.f32 %v177, %v180
        %v182 = vsel %vm130, %v170, -inf
        %v183 = vmax.f32 %v179, %v182
        %v184 = vsel %vm130, %v172, -inf
        %v185 = vmax.f32 %v181, %v184
        %v186 = vsel %vm130, %v174, -inf
        %v187 = vmax.f32 %v183, %v186
        %v188 = vmax.f32 %v187, %v185
        %v189 = vsel %vm130, %v163, -inf
        %v190 = vsel %vm130, %v165, -inf
        %v191 = vsel %vm130, %v167, -inf
        %v192 = vmax.f32 %v189, %v191
        %v193 = vsel %vm130, %v169, -inf
        %v194 = vmax.f32 %v190, %v193
        %v195 = vsel %vm130, %v171, -inf
        %v196 = vmax.f32 %v192, %v195
        %v197 = vsel %vm130, %v173, -inf
        %v198 = vmax.f32 %v194, %v197
        %v199 = vsel %vm130, %v175, -inf
        %v200 = vmax.f32 %v196, %v199
        %v201 = vmax.f32 %v200, %v198
        %v202 = vmax.f32 %v145, %v188
        %v203 = vmax.f32 %v160, %v201
        %v204 = vsel %vm130, %v202, -inf
        %vm205 = vcmask 30720
        %v206 = vsel %vm205, %v203, -inf
        %v207 = vmax.f32 %v204, %v206
        %v208 = vrot.slane %v207, 4
        %v209 = vmax.f32 %v207, %v208
        %v210 = vrot.slane %v209, 2
        %v211 = vmax.f32 %v209, %v210
        %v212 = vrot.slane %v211, 1
        %v213 = vmax.f32 %v211, %v212
        %v214 = vmax.f32 %v145, %v162
        %v215 = vmax.f32 %v160, %v163
        %v216 = vsel %vm130, %v214, -inf
        %vm217 = vcmask 24576
        %v218 = vsel %vm217, %v215, -inf
        %v219 = vmax.f32 %v216, %v218
        %v220 = vrot.slane %v219, 4
        %v221 = vmax.f32 %v219, %v220
        %v222 = vrot.slane %v221, 2
        %v223 = vmax.f32 %v221, %v222
        %v224 = vrot.slane %v223, 1
        %v225 = vmax.f32 %v223, %v224
        %vm226 = vcmask 31747
        %v227 = vsel %vm226, %v214, -inf
        %vm228 = vcmask 27648
        %v229 = vsel %vm228, %v215, -inf
        %v230 = vmax.f32 %v227, %v229
        %v231 = vrot.slane %v230, 4
        %v232 = vmax.f32 %v230, %v231
        %v233 = vrot.slane %v232, 2
        %v234 = vmax.f32 %v232, %v233
        %v235 = vrot.slane %v234, 1
        %v236 = vmax.f32 %v234, %v235
        %s237 = scalar_lea.vmem %s113, 48
        %v238 = vld [vmem:[%s237] sm:$0xff]
        %v239 = vld [vmem:[%s237 + $0x8] sm:$0xff]
        %v240 = vld [vmem:[%s237 + $0x10] sm:$0xff]
        %v241 = vld [vmem:[%s237 + $0x18] sm:$0xff]
        %v242 = vld [vmem:[%s237 + $0x20] sm:$0xff]
        %v243 = vld [vmem:[%s237 + $0x28] sm:$0xff]
        %v244 = vld [vmem:[%s237 + $0x30] sm:$0xff]
        %v245 = vld [vmem:[%s237 + $0x38] sm:$0xff]
        %v246 = vld [vmem:[%s237 + $0x40] sm:$0xff]
        %v247 = vld [vmem:[%s237 + $0x48] sm:$0xff]
        %v248 = vld [vmem:[%s237 + $0x50] sm:$0xff]
        %v249 = vld [vmem:[%s237 + $0x58] sm:$0xff]
        %v250 = vld [vmem:[%s237 + $0x60] sm:$0xff]
        %v251 = vld [vmem:[%s237 + $0x68] sm:$0xff]
        %v252 = vld [vmem:[%s237 + $0x70] sm:$0xff]
        %v253 = vld [vmem:[%s237 + $0x78] sm:$0xff]
        %v254 = vsel %vm130, %v238, -inf
        %v255 = vsel %vm130, %v240, -inf
        %v256 = vsel %vm130, %v242, -inf
        %v257 = vmax.f32 %v254, %v256
        %v258 = vsel %vm130, %v244, -inf
        %v259 = vmax.f32 %v255, %v258
        %v260 = vsel %vm130, %v246, -inf
        %v261 = vmax.f32 %v257, %v260
        %v262 = vsel %vm130, %v248, -inf
        %v263 = vmax.f32 %v259, %v262
        %v264 = vsel %vm130, %v250, -inf
        %v265 = vmax.f32 %v261, %v264
        %v266 = vsel %vm130, %v252, -inf
        %v267 = vmax.f32 %v263, %v266
        %v268 = vmax.f32 %v265, %v267
        %v269 = vsel %vm130, %v239, -inf
        %v270 = vsel %vm130, %v241, -inf
        %v271 = vsel %vm130, %v243, -inf
        %v272 = vmax.f32 %v269, %v271
        %v273 = vsel %vm130, %v245, -inf
        %v274 = vmax.f32 %v270, %v273
        %v275 = vsel %vm130, %v247, -inf
        %v276 = vmax.f32 %v272, %v275
        %v277 = vsel %vm130, %v249, -inf
        %v278 = vmax.f32 %v274, %v277
        %v279 = vsel %vm130, %v251, -inf
        %v280 = vmax.f32 %v276, %v279
        %v281 = vsel %vm130, %v253, -inf
        %v282 = vmax.f32 %v278, %v281
        %v283 = vmax.f32 %v280, %v282
        %s284 = scalar_lea.vmem %s113, 176
        %v285 = vld [vmem:[%s284] sm:$0xff]
        %v286 = vld [vmem:[%s284 + $0x8] sm:$0xff]
        %v287 = vmax.f32 %v268, %v285
        %v288 = vmax.f32 %v283, %v286
        %v289 = vsel %vm130, %v287, -inf
        %v290 = vsel %vm217, %v288, -inf
        %v291 = vmax.f32 %v289, %v290
        %v292 = vrot.slane %v291, 4
        %v293 = vmax.f32 %v291, %v292
        %v294 = vrot.slane %v293, 2
        %v295 = vmax.f32 %v293, %v294
        %v296 = vrot.slane %v295, 1
        %v297 = vmax.f32 %v295, %v296
        %v298 = vsel %vm226, %v287, -inf
        %v299 = vsel %vm228, %v288, -inf
        %v300 = vmax.f32 %v298, %v299
        %v301 = vrot.slane %v300, 4
        %v302 = vmax.f32 %v300, %v301
        %v303 = vrot.slane %v302, 2
        %v304 = vmax.f32 %v302, %v303
        %v305 = vrot.slane %v304, 1
        %v306 = vmax.f32 %v304, %v305
        %v307 = vmax.f32 %v142, %v140
        %v308 = vmax.f32 %v157, %v155
        %v309 = vsel %vm205, %v307, -inf
        %v310 = vrot.slane %v309, 4
        %v311 = vmax.f32 %v309, %v310
        %v312 = vrot.slane %v311, 2
        %v313 = vmax.f32 %v311, %v312
        %v314 = vrot.slane %v313, 1
        %v315 = vmax.f32 %v313, %v314
        %vm316 = vcmask 31746
        %v317 = vsel %vm316, %v307, -inf
        %v318 = vsel %vm217, %v308, -inf
        %v319 = vmax.f32 %v317, %v318
        %v320 = vrot.slane %v319, 4
        %v321 = vmax.f32 %v319, %v320
        %v322 = vrot.slane %v321, 2
        %v323 = vmax.f32 %v321, %v322
        %v324 = vrot.slane %v323, 1
        %v325 = vmax.f32 %v323, %v324
        %vm326 = vcmask 31748
        %v327 = vsel %vm326, %v307, -inf
        %vm328 = vcmask 26624
        %v329 = vsel %vm328, %v308, -inf
        %v330 = vmax.f32 %v327, %v329
        %v331 = vrot.slane %v330, 4
        %v332 = vmax.f32 %v330, %v331
        %v333 = vrot.slane %v332, 2
        %v334 = vmax.f32 %v332, %v333
        %v335 = vrot.slane %v334, 1
        %v336 = vmax.f32 %v334, %v335
        %s337 = scalar_lea.vmem %s113, 32
        %v338 = vld [vmem:[%s337] sm:$0xff]
        %v339 = vld [vmem:[%s337 + $0x8] sm:$0xff]
        %v340 = vld [vmem:[%s337 + $0x10] sm:$0xff]
        %v341 = vld [vmem:[%s337 + $0x18] sm:$0xff]
        %v342 = vld [vmem:[%s337 + $0x20] sm:$0xff]
        %v343 = vld [vmem:[%s337 + $0x28] sm:$0xff]
        %v344 = vld [vmem:[%s337 + $0x30] sm:$0xff]
        %v345 = vld [vmem:[%s337 + $0x38] sm:$0xff]
        %v346 = vld [vmem:[%s337 + $0x40] sm:$0xff]
        %v347 = vld [vmem:[%s337 + $0x48] sm:$0xff]
        %v348 = vld [vmem:[%s337 + $0x50] sm:$0xff]
        %v349 = vld [vmem:[%s337 + $0x58] sm:$0xff]
        %v350 = vld [vmem:[%s337 + $0x60] sm:$0xff]
        %v351 = vld [vmem:[%s337 + $0x68] sm:$0xff]
        %v352 = vsel %vm130, %v338, -inf
        %v353 = vsel %vm130, %v340, -inf
        %v354 = vsel %vm130, %v342, -inf
        %v355 = vmax.f32 %v352, %v354
        %v356 = vsel %vm130, %v344, -inf
        %v357 = vmax.f32 %v353, %v356
        %v358 = vsel %vm130, %v346, -inf
        %v359 = vmax.f32 %v355, %v358
        %v360 = vsel %vm130, %v348, -inf
        %v361 = vmax.f32 %v357, %v360
        %v362 = vsel %vm130, %v350, -inf
        %v363 = vmax.f32 %v359, %v362
        %v364 = vmax.f32 %v363, %v361
        %v365 = vsel %vm130, %v339, -inf
        %v366 = vsel %vm130, %v341, -inf
        %v367 = vsel %vm130, %v343, -inf
        %v368 = vmax.f32 %v365, %v367
        %v369 = vsel %vm130, %v345, -inf
        %v370 = vmax.f32 %v366, %v369
        %v371 = vsel %vm130, %v347, -inf
        %v372 = vmax.f32 %v368, %v371
        %v373 = vsel %vm130, %v349, -inf
        %v374 = vmax.f32 %v370, %v373
        %v375 = vsel %vm130, %v351, -inf
        %v376 = vmax.f32 %v372, %v375
        %v377 = vmax.f32 %v376, %v374
        %v378 = vsel %vm205, %v364, -inf
        %v379 = vrot.slane %v378, 4
        %v380 = vmax.f32 %v378, %v379
        %v381 = vrot.slane %v380, 2
        %v382 = vmax.f32 %v380, %v381
        %v383 = vrot.slane %v382, 1
        %v384 = vmax.f32 %v382, %v383
        %v385 = vsel %vm316, %v364, -inf
        %v386 = vsel %vm217, %v377, -inf
        %v387 = vmax.f32 %v385, %v386
        %v388 = vrot.slane %v387, 4
        %v389 = vmax.f32 %v387, %v388
        %v390 = vrot.slane %v389, 2
        %v391 = vmax.f32 %v389, %v390
        %v392 = vrot.slane %v391, 1
        %v393 = vmax.f32 %v391, %v392
        %v394 = vsel %vm326, %v364, -inf
        %v395 = vsel %vm328, %v377, -inf
        %v396 = vmax.f32 %v394, %v395
        %v397 = vrot.slane %v396, 4
        %v398 = vmax.f32 %v396, %v397
        %v399 = vrot.slane %v398, 2
        %v400 = vmax.f32 %v398, %v399
        %v401 = vrot.slane %v400, 1
        %v402 = vmax.f32 %v400, %v401
        %s403 = scalar_lea.vmem %s113, 64
        %v404 = vld [vmem:[%s403] sm:$0xff]
        %v405 = vld [vmem:[%s403 + $0x8] sm:$0xff]
        %v406 = vld [vmem:[%s403 + $0x10] sm:$0xff]
        %v407 = vld [vmem:[%s403 + $0x18] sm:$0xff]
        %v408 = vld [vmem:[%s403 + $0x20] sm:$0xff]
        %v409 = vld [vmem:[%s403 + $0x28] sm:$0xff]
        %v410 = vld [vmem:[%s403 + $0x30] sm:$0xff]
        %v411 = vld [vmem:[%s403 + $0x38] sm:$0xff]
        %v412 = vld [vmem:[%s403 + $0x40] sm:$0xff]
        %v413 = vld [vmem:[%s403 + $0x48] sm:$0xff]
        %v414 = vld [vmem:[%s403 + $0x50] sm:$0xff]
        %v415 = vld [vmem:[%s403 + $0x58] sm:$0xff]
        %v416 = vld [vmem:[%s403 + $0x60] sm:$0xff]
        %v417 = vld [vmem:[%s403 + $0x68] sm:$0xff]
        %v418 = vsel %vm130, %v404, -inf
        %v419 = vsel %vm130, %v406, -inf
        %v420 = vsel %vm130, %v408, -inf
        %v421 = vmax.f32 %v418, %v420
        %v422 = vsel %vm130, %v410, -inf
        %v423 = vmax.f32 %v419, %v422
        %v424 = vsel %vm130, %v412, -inf
        %v425 = vmax.f32 %v421, %v424
        %v426 = vsel %vm130, %v414, -inf
        %v427 = vmax.f32 %v423, %v426
        %v428 = vsel %vm130, %v416, -inf
        %v429 = vmax.f32 %v425, %v428
        %v430 = vmax.f32 %v429, %v427
        %v431 = vsel %vm130, %v405, -inf
        %v432 = vsel %vm130, %v407, -inf
        %v433 = vsel %vm130, %v409, -inf
        %v434 = vmax.f32 %v431, %v433
        %v435 = vsel %vm130, %v411, -inf
        %v436 = vmax.f32 %v432, %v435
        %v437 = vsel %vm130, %v413, -inf
        %v438 = vmax.f32 %v434, %v437
        %v439 = vsel %vm130, %v415, -inf
        %v440 = vmax.f32 %v436, %v439
        %v441 = vsel %vm130, %v417, -inf
        %v442 = vmax.f32 %v438, %v441
        %v443 = vmax.f32 %v442, %v440
        %v444 = vsel %vm205, %v430, -inf
        %v445 = vrot.slane %v444, 4
        %v446 = vmax.f32 %v444, %v445
        %v447 = vrot.slane %v446, 2
        %v448 = vmax.f32 %v446, %v447
        %v449 = vrot.slane %v448, 1
        %v450 = vmax.f32 %v448, %v449
        %v451 = vsel %vm316, %v430, -inf
        %v452 = vsel %vm217, %v443, -inf
        %v453 = vmax.f32 %v451, %v452
        %v454 = vrot.slane %v453, 4
        %v455 = vmax.f32 %v453, %v454
        %v456 = vrot.slane %v455, 2
        %v457 = vmax.f32 %v455, %v456
        %v458 = vrot.slane %v457, 1
        %v459 = vmax.f32 %v457, %v458
        %v460 = vsel %vm326, %v430, -inf
        %v461 = vsel %vm328, %v443, -inf
        %v462 = vmax.f32 %v460, %v461
        %v463 = vrot.slane %v462, 4
        %v464 = vmax.f32 %v462, %v463
        %v465 = vrot.slane %v464, 2
        %v466 = vmax.f32 %v464, %v465
        %v467 = vrot.slane %v466, 1
        %v468 = vmax.f32 %v466, %v467
        %vm469 = vcmask 1040384
        %v470 = vsel %vm469, %v213, %v225
        %vm471 = vcmask 1041408
        %v472 = vsel %vm471, %v470, %v236
        %vm473 = vcmask 1042432
        %v474 = vsel %vm473, %v472, %v297
        %vm475 = vcmask 1043456
        %v476 = vsel %vm475, %v474, %v306
        %vm477 = vcmask 1044480
        %v478 = vsel %vm477, %v476, %v315
        %vm479 = vcmask 1045504
        %v480 = vsel %vm479, %v478, %v325
        %vm481 = vcmask 1046528
        %v482 = vsel %vm481, %v480, %v336
        %v483 = vsel %vm469, %v384, %v393
        %v484 = vsel %vm471, %v483, %v402
        %v485 = vsel %vm473, %v484, %v450
        %v486 = vsel %vm475, %v485, %v459
        %v487 = vsel %vm477, %v486, %v468
        %v488 = vmul.f32 %v482, %v482
        %v489 = vmul.f32 %v487, %v487
        %v490 = vsel %vm130, %v488, 0.0
        %491 = vadd.xlane.f32.xlu0 %v490
        %v492 = vpop.xlane.xlu0 %491
        %vm493 = vcmask 29696
        %v494 = vsel %vm493, %v489, 0.0
        %495 = vadd.xlane.f32.xlu0 %v494
        %v496 = vpop.xlane.xlu0 %495
        %v497 = vrsqrt.pop %v492
        %v498 = vrsqrt.pop %v496
        %v499 = vmul.f32 %v482, %v497
        %v500 = vmul.f32 %v487, %v498
        %v501 = vsel %vm130, %v499, 0.0
        %v502 = vsel %vm493, %v500, 0.0
        %v503 = vadd.f32 %v501, %v502
        %v504 = vrot.slane %v503, 4
        %v505 = vadd.f32 %v503, %v504
        %v506 = vrot.slane %v505, 2
        %v507 = vadd.f32 %v505, %v506
        %v508 = vrot.slane %v507, 1
        %v509 = vadd.f32 %v507, %v508
        %510 = vst.msk [vmem:[%s108] sm:$0x1] %vm217, %v509
        %s511 = sand.u32 %s49, 1
        %s512 = scalar_lea.sflag [#allocation3], %s511
        %s513 = sand.u32 %s49, 1
        %s514 = scalar_lea.vmem [#allocation2], %s513
        // Predicated region
        $region25: #{tpu_custom_call.1} parent=23 // pred_check
          %p515 = pneg %p59
        $region26: #{tpu_custom_call.1} parent=23 // pred_check_branch
          %517 = sbr.rel (%p515) target = $region28
        $region27: #{tpu_custom_call.1} parent=23 // pred_region
          %s519 = ssub.s32 16, 16
          %520 = vsyncadd %s512, %s519
          %s521 = smul.addr %s15, 16
          %s522 = scalar_lea.hbm %s1, %s521
          %s524 = sshll.u32 %s514, 4
          %s525 = int_to_ptr.vmem [resolvable:$true] %s524
          %527 = dma.vmem_to_hbm [thread:$0]  %s525, 16, %s522, %s512
        $region28: #{tpu_custom_call.1} parent=23 // pred_fallthru
          _
      $region24: #{tpu_custom_call.1} parent=5 // pred_fallthru
        _
      %p528 = scmp.le.s32.totalorder 2, %s10
      // Predicated region
      $region29: #{tpu_custom_call.1} parent=5 // pred_check
        %p529 = pneg %p528
      $region30: #{tpu_custom_call.1} parent=5 // pred_check_branch
        %531 = sbr.rel (%p529) target = $region32
      $region31: #{tpu_custom_call.1} parent=5 // pred_region
        %s532 = ssub.s32 %s10, 2
        // Predicated region
        $region33: #{tpu_custom_call.1} parent=31 // pred_check
          %p533 = pneg %p65
        $region34: #{tpu_custom_call.1} parent=31 // pred_check_branch
          %535 = sbr.rel (%p533) target = $region36
        $region35: #{tpu_custom_call.1} parent=31 // pred_region
          %s536 = sand.u32 %s50, 1
          %s537 = scalar_lea.sflag [#allocation3], %s536
          %s538 = sand.u32 %s50, 1
          %s539 = scalar_lea.vmem [#allocation2], %s538
          %540 = dma.done %s537, 16
        $region36: #{tpu_custom_call.1} parent=31 // pred_fallthru
          _
      $region32: #{tpu_custom_call.1} parent=5 // pred_fallthru
        _
    $region6: #{tpu_custom_call.1} parent=1 // loop_footer
      %s14 = sadd.s32 1, %s10
    $region7: #{tpu_custom_call.1} parent=1 // loop_footer_branch
      %9 = sbr.rel target = $region3
    $region8: #{tpu_custom_call.1} parent=1 // loop_exit
      _
    %541 = vsyncpa [#allocation3], 1
    %s542 = scalar_lea.sflag [#allocation3], 1
    %543 = vsyncpa %s542, 1

</llo_original>
